<compile_context>
chip_gen: v7x
topology: tpu7x:2x2x1
jax: 0.10.0
libtpu: 0.0.40
codegen_flags: <defaults>
</compile_context>

<pallas_src>
import jax
import jax.numpy as jnp
from jax.experimental import pallas as pl
from jax.experimental.pallas import tpu as pltpu


LANES = 128                      # lane width of the flattened slab
ACC_ROWS = 8                     # sublane height of the one-vreg f32 accumulator
NUM_CORES = 2                    # leading 'parallel' axis (2 TCs on v7x)
TARGET_BLOCK_BYTES = 4 << 20     # per-input per-buffer DMA block size


def _round_up(x, m):
    return (x + m - 1) // m * m


def _make_kernel(has_w, valid_rows, tile_rows, steps_per_core,
                 first_masked_block, any_mask):
    """Kernel body. All tiling parameters are baked as Python constants."""

    def kernel(*refs):
        if has_w:
            p_ref, t_ref, w_ref, o_ref, acc_ref = refs
        else:
            p_ref, t_ref, o_ref, acc_ref = refs
            w_ref = None

        c = pl.program_id(0)      # core (parallel) axis
        i = pl.program_id(1)      # reduction axis

        @pl.when(i == 0)
        def _():
            acc_ref[...] = jnp.zeros_like(acc_ref)

        # Elementwise squared error; upcast to f32 on the VPU, hidden under DMA.
        d = p_ref[...].astype(jnp.float32) - t_ref[...].astype(jnp.float32)
        wl = d * d
        if has_w:
            wl = wl * w_ref[...].astype(jnp.float32)

        def accumulate(x):
            # Partial reduce to one (8,128) vreg: pure VALU adds, no XLU.
            acc_ref[...] += jnp.sum(
                x.reshape(tile_rows // ACC_ROWS, ACC_ROWS, LANES), axis=0)

        if any_mask:
            gb = c * steps_per_core + i          # global block index

            @pl.when(gb < first_masked_block)    # common case: no mask work
            def _():
                accumulate(wl)

            @pl.when(gb >= first_masked_block)   # ragged / duplicate blocks only
            def _():
                row = gb * tile_rows + jax.lax.broadcasted_iota(
                    jnp.int32, (tile_rows, LANES), 0)
                # select (not multiply) so DMA garbage NaN/Inf is discarded
                accumulate(jnp.where(row < valid_rows, wl, 0.0))
        else:
            accumulate(wl)

        @pl.when(i == pl.num_programs(1) - 1)
        def _():
            # Each core writes its own (8,128) partial; wrapper sums them.
            o_ref[0] = acc_ref[...]

    return kernel


def _main_sum_pallas(p2, t2, w2, rows, tile_rows):
    """sum over a (rows, 128) slab of (p - t)^2 [* w], f32, via Pallas."""
    has_w = w2 is not None
    operands = (p2, t2) + ((w2,) if has_w else ())
    itemsizes = [jnp.dtype(o.dtype).itemsize for o in operands]

    if tile_rows is None:
        # Byte-targeted block size: ~4 MiB per (largest-dtype) input per buffer.
        tile_rows = max(ACC_ROWS, TARGET_BLOCK_BYTES // (LANES * max(itemsizes)))
    tile_rows_eff = max(ACC_ROWS,
                        min(_round_up(tile_rows, ACC_ROWS),
                            _round_up(rows, ACC_ROWS)))

    total_blocks = pl.cdiv(rows, tile_rows_eff)
    steps_per_core = pl.cdiv(total_blocks, NUM_CORES)
    padded_blocks = NUM_CORES * steps_per_core
    last_block = total_blocks - 1
    if rows % tile_rows_eff:
        first_masked_block = rows // tile_rows_eff   # ragged last real block
    else:
        first_masked_block = total_blocks            # only duplicate blocks masked
    any_mask = first_masked_block < padded_blocks

    def in_idx(c, i):
        gb = c * steps_per_core + i
        # Clamp the (at most one) duplicate trailing block back in bounds; its
        # contribution is masked to zero inside the kernel.
        return (jnp.minimum(gb, last_block), 0)

    block = pl.BlockSpec((tile_rows_eff, LANES), in_idx)
    in_specs = [block] * len(operands)

    in_block_bytes = sum(tile_rows_eff * LANES * s for s in itemsizes)
    # 2 buffers per input stream + headroom; >= default scoped limits, <= v7x VMEM.
    vmem_limit = min(max(2 * in_block_bytes + (4 << 20), 32 << 20), 64 << 20)

    n_elems = rows * LANES
    cost = pl.CostEstimate(
        flops=(4 if has_w else 3) * n_elems,
        transcendentals=0,
        bytes_accessed=sum(int(o.size) * s for o, s in zip(operands, itemsizes))
        + NUM_CORES * ACC_ROWS * LANES * 4,
    )

    kernel = _make_kernel(has_w, rows, tile_rows_eff, steps_per_core,
                          first_masked_block, any_mask)

    partials = pl.pallas_call(
        kernel,
        out_shape=jax.ShapeDtypeStruct((NUM_CORES, ACC_ROWS, LANES), jnp.float32),
        grid_spec=pltpu.PrefetchScalarGridSpec(
            num_scalar_prefetch=0,
            grid=(NUM_CORES, steps_per_core),
            in_specs=in_specs,
            out_specs=pl.BlockSpec((1, ACC_ROWS, LANES), lambda c, i: (c, 0, 0)),
            scratch_shapes=[pltpu.VMEM((ACC_ROWS, LANES), jnp.float32)],
        ),
        compiler_params=pltpu.CompilerParams(
            dimension_semantics=("parallel", "arbitrary"),
            vmem_limit_bytes=vmem_limit,
        ),
        cost_estimate=cost,
    )(*operands)

    return jnp.sum(partials)


def weighted_loss(pred, targ, weights=1.0, *, tile_rows=None):
    """mean(elementwise_l2(pred, targ) * weights): WeightedLoss forward with an
    L2 elementwise loss. `weights` may be a scalar (Python / NumPy / 0-d jnp —
    no extra HBM stream) or an array broadcastable to pred.shape."""
    assert pred.shape == targ.shape
    n = pred.size
    out_dtype = jnp.result_type(pred.dtype, targ.dtype)

    # --- normalize weights ---------------------------------------------------
    w_scalar = None
    w_full = None
    if isinstance(weights, (int, float)):
        w_scalar = weights
    else:
        wj = jnp.asarray(weights)
        if wj.ndim == 0:
            w_scalar = wj            # 0-d (possibly traced) scalar, folded below
        else:
            # TODO(synk): low-rank weights still materialize a full HBM stream.
            w_full = jnp.broadcast_to(wj, pred.shape)
    has_w = w_full is not None

    # --- 128-aligned prefix goes through the kernel; tiny tail stays in JAX ---
    tail = n % LANES
    n_main = n - tail
    rows = n_main // LANES

    flat_p = pred.reshape(-1)
    flat_t = targ.reshape(-1)
    flat_w = w_full.reshape(-1) if has_w else None

    total = jnp.float32(0.0)

    if tail:
        dt = (flat_p[n_main:].astype(jnp.float32)
              - flat_t[n_main:].astype(jnp.float32))
        tl = dt * dt
        if has_w:
            tl = tl * flat_w[n_main:].astype(jnp.float32)
        total = total + jnp.sum(tl)

    if rows > 0:
        p2 = flat_p[:n_main].reshape(rows, LANES)
        t2 = flat_t[:n_main].reshape(rows, LANES)
        w2 = flat_w[:n_main].reshape(rows, LANES) if has_w else None
        total = total + _main_sum_pallas(p2, t2, w2, rows, tile_rows)

    mean = total / jnp.float32(n)
    if w_scalar is not None:
        if isinstance(w_scalar, (int, float)):
            if w_scalar != 1:
                mean = mean * jnp.float32(w_scalar)
        else:
            mean = mean * w_scalar.astype(jnp.float32)
    return mean.astype(out_dtype)


if __name__ == "__main__":
    key = jax.random.PRNGKey(0)
    k1, k2, k3, k4, k5 = jax.random.split(key, 5)

    # Small NCHW shapes consistent with the module's generic tensor forward.
    B, C, H, W = 2, 4, 16, 16
    pred = jax.random.normal(k1, (B, C, H, W), dtype=jnp.float32)
    targ = jax.random.normal(k2, (B, C, H, W), dtype=jnp.float32)
    weights = jax.random.uniform(k3, (B, C, H, W), dtype=jnp.float32)

    # Tensor weights / default scalar / 0-d jnp scalar weight.
    out_w = jax.block_until_ready(weighted_loss(pred, targ, weights))
    out_s = jax.block_until_ready(weighted_loss(pred, targ))
    out_0d = jax.block_until_ready(weighted_loss(pred, targ, jnp.float32(2.5)))

    # bf16 inputs exercise the "stream original dtype, upcast in kernel" path.
    pred_bf = pred.astype(jnp.bfloat16)
    targ_bf = targ.astype(jnp.bfloat16)
    out_bf = jax.block_until_ready(weighted_loss(pred_bf, targ_bf))

    # Non-128-multiple numel (945 = 7*128 + 49): prefix-kernel + JAX-tail path.
    pr = jax.random.normal(k4, (5, 3, 9, 7), dtype=jnp.float32)
    tr = jax.random.normal(k5, (5, 3, 9, 7), dtype=jnp.float32)
    out_r = jax.block_until_ready(weighted_loss(pr, tr, 3.0))

    # Pure-JAX references.
    ref_w = jnp.mean((pred - targ) ** 2 * weights)
    ref_s = jnp.mean((pred - targ) ** 2)
    ref_0d = jnp.mean((pred - targ) ** 2) * 2.5
    ref_bf = jnp.mean((pred_bf.astype(jnp.float32)
                       - targ_bf.astype(jnp.float32)) ** 2).astype(jnp.bfloat16)
    ref_r = jnp.mean((pr - tr) ** 2) * 3.0

    assert jnp.allclose(out_w, ref_w, rtol=1e-5, atol=1e-6), (out_w, ref_w)
    assert jnp.allclose(out_s, ref_s, rtol=1e-5, atol=1e-6), (out_s, ref_s)
    assert jnp.allclose(out_0d, ref_0d, rtol=1e-5, atol=1e-6), (out_0d, ref_0d)
    assert jnp.allclose(out_bf.astype(jnp.float32), ref_bf.astype(jnp.float32),
                        rtol=2e-2, atol=2e-2), (out_bf, ref_bf)
    assert jnp.allclose(out_r, ref_r, rtol=1e-5, atol=1e-6), (out_r, ref_r)

    print("KERNEL_OK")
</pallas_src>

<mosaic_0001>
module attributes {stable_mosaic.version = 11 : i64} {
  func.func @kernel(%arg0: i32, %arg1: i32, %arg2: memref<16x128xf32, #tpu.memory_space<vmem>>, %arg3: memref<16x128xf32, #tpu.memory_space<vmem>>, %arg4: memref<16x128xf32, #tpu.memory_space<vmem>>, %arg5: memref<1x8x128xf32, #tpu.memory_space<vmem>>, %arg6: memref<8x128xf32, #tpu.memory_space<vmem>>) attributes {dimension_semantics = [#tpu.dimension_semantics<parallel>, #tpu.dimension_semantics<arbitrary>], iteration_bounds = array<i64: 2, 1>, scalar_prefetch = 0 : i64, scratch_operands = 1 : i64, tpu.core_type = #tpu.core_type<tc>, window_params = [{transform_indices = @transform_0, window_bounds = array<i64: 16, 128>}, {transform_indices = @transform_1, window_bounds = array<i64: 16, 128>}, {transform_indices = @transform_2, window_bounds = array<i64: 16, 128>}, {transform_indices = @transform_3, window_bounds = array<i64: 1, 8, 128>}]} {
    %c0_i32 = arith.constant 0 : i32
    %0 = arith.cmpi eq, %arg1, %c0_i32 : i32
    %1 = arith.extui %0 : i1 to i32
    %c0_i32_0 = arith.constant 0 : i32
    %2 = arith.cmpi ne, %1, %c0_i32_0 : i32
    scf.if %2 {
      %cst = arith.constant 0.000000e+00 : f32
      %20 = vector.broadcast %cst : f32 to vector<8x128xf32>
      %c0_12 = arith.constant 0 : index
      %c0_13 = arith.constant 0 : index
      %21 = vector.load %arg6[%c0_12, %c0_13] : memref<8x128xf32, #tpu.memory_space<vmem>>, vector<8x128xf32>
      tpu.vector_store %arg6[%c0_12, %c0_13], %20 {strides = array<i32>} : memref<8x128xf32, #tpu.memory_space<vmem>>, vector<8x128xf32>,
    } else {
    }
    %c0 = arith.constant 0 : index
    %c0_1 = arith.constant 0 : index
    %3 = vector.load %arg2[%c0, %c0_1] : memref<16x128xf32, #tpu.memory_space<vmem>>, vector<16x128xf32>
    %c0_2 = arith.constant 0 : index
    %c0_3 = arith.constant 0 : index
    %4 = vector.load %arg3[%c0_2, %c0_3] : memref<16x128xf32, #tpu.memory_space<vmem>>, vector<16x128xf32>
    %5 = arith.subf %3, %4 : vector<16x128xf32>
    %6 = arith.mulf %5, %5 : vector<16x128xf32>
    %c0_4 = arith.constant 0 : index
    %c0_5 = arith.constant 0 : index
    %7 = vector.load %arg4[%c0_4, %c0_5] : memref<16x128xf32, #tpu.memory_space<vmem>>, vector<16x128xf32>
    %8 = arith.mulf %6, %7 : vector<16x128xf32>
    %c1_i32 = arith.constant 1 : i32
    %9 = arith.muli %arg0, %c1_i32 : i32
    %10 = arith.addi %9, %arg1 : i32
    %c1_i32_6 = arith.constant 1 : i32
    %11 = arith.cmpi slt, %10, %c1_i32_6 : i32
    %12 = arith.extui %11 : i1 to i32
    %c0_i32_7 = arith.constant 0 : i32
    %13 = arith.cmpi ne, %12, %c0_i32_7 : i32
    scf.if %13 {
      %c0_12 = arith.constant 0 : index
      %c0_13 = arith.constant 0 : index
      %20 = vector.load %arg6[%c0_12, %c0_13] : memref<8x128xf32, #tpu.memory_space<vmem>>, vector<8x128xf32>
      %21 = vector.shape_cast %8 : vector<16x128xf32> to vector<2x8x128xf32>
      %cst = arith.constant dense<0.000000e+00> : vector<8x128xf32>
      %22 = vector.multi_reduction <add>, %21, %cst [0] : vector<2x8x128xf32> to vector<8x128xf32>
      %23 = arith.addf %20, %22 : vector<8x128xf32>
      %c0_14 = arith.constant 0 : index
      %c0_15 = arith.constant 0 : index
      %24 = vector.load %arg6[%c0_14, %c0_15] : memref<8x128xf32, #tpu.memory_space<vmem>>, vector<8x128xf32>
      tpu.vector_store %arg6[%c0_14, %c0_15], %23 {strides = array<i32>} : memref<8x128xf32, #tpu.memory_space<vmem>>, vector<8x128xf32>,
    } else {
    }
    %c1_i32_8 = arith.constant 1 : i32
    %14 = arith.cmpi sge, %10, %c1_i32_8 : i32
    %15 = arith.extui %14 : i1 to i32
    %c0_i32_9 = arith.constant 0 : i32
    %16 = arith.cmpi ne, %15, %c0_i32_9 : i32
    scf.if %16 {
      %c16_i32 = arith.constant 16 : i32
      %20 = arith.muli %10, %c16_i32 : i32
      %21 = tpu.iota {dimensions = array<i32: 0>} : vector<16x128xi32>
      %22 = vector.broadcast %20 : i32 to vector<16x128xi32>
      %23 = arith.addi %22, %21 : vector<16x128xi32>
      %c16_i32_12 = arith.constant 16 : i32
      %24 = vector.broadcast %c16_i32_12 : i32 to vector<16x128xi32>
      %25 = arith.cmpi slt, %23, %24 : vector<16x128xi32>
      %cst = arith.constant 0.000000e+00 : f32
      %26 = vector.broadcast %cst : f32 to vector<16x128xf32>
      %27 = arith.select %25, %8, %26 : vector<16x128xi1>, vector<16x128xf32>
      %c0_13 = arith.constant 0 : index
      %c0_14 = arith.constant 0 : index
      %28 = vector.load %arg6[%c0_13, %c0_14] : memref<8x128xf32, #tpu.memory_space<vmem>>, vector<8x128xf32>
      %29 = vector.shape_cast %27 : vector<16x128xf32> to vector<2x8x128xf32>
      %cst_15 = arith.constant dense<0.000000e+00> : vector<8x128xf32>
      %30 = vector.multi_reduction <add>, %29, %cst_15 [0] : vector<2x8x128xf32> to vector<8x128xf32>
      %31 = arith.addf %28, %30 : vector<8x128xf32>
      %c0_16 = arith.constant 0 : index
      %c0_17 = arith.constant 0 : index
      %32 = vector.load %arg6[%c0_16, %c0_17] : memref<8x128xf32, #tpu.memory_space<vmem>>, vector<8x128xf32>
      tpu.vector_store %arg6[%c0_16, %c0_17], %31 {strides = array<i32>} : memref<8x128xf32, #tpu.memory_space<vmem>>, vector<8x128xf32>,
    } else {
    }
    %c0_i32_10 = arith.constant 0 : i32
    %17 = arith.cmpi eq, %arg1, %c0_i32_10 : i32
    %18 = arith.extui %17 : i1 to i32
    %c0_i32_11 = arith.constant 0 : i32
    %19 = arith.cmpi ne, %18, %c0_i32_11 : i32
    scf.if %19 {
      %c0_12 = arith.constant 0 : index
      %c0_13 = arith.constant 0 : index
      %20 = vector.load %arg6[%c0_12, %c0_13] : memref<8x128xf32, #tpu.memory_space<vmem>>, vector<8x128xf32>
      %c0_14 = arith.constant 0 : index
      %c0_15 = arith.constant 0 : index
      %c0_16 = arith.constant 0 : index
      %21 = vector.load %arg5[%c0_14, %c0_15, %c0_16] : memref<1x8x128xf32, #tpu.memory_space<vmem>>, vector<1x8x128xf32>
      %22 = vector.shape_cast %21 : vector<1x8x128xf32> to vector<8x128xf32>
      %23 = vector.shape_cast %20 : vector<8x128xf32> to vector<1x8x128xf32>
      tpu.vector_store %arg5[%c0_14, %c0_15, %c0_16], %23 {strides = array<i32>} : memref<1x8x128xf32, #tpu.memory_space<vmem>>, vector<1x8x128xf32>,
    } else {
    }
    return
  }
  func.func @transform_0(%arg0: i32, %arg1: i32) -> (i32, i32) {
    %c1_i32 = arith.constant 1 : i32
    %0 = arith.muli %arg0, %c1_i32 : i32
    %1 = arith.addi %0, %arg1 : i32
    %c0_i32 = arith.constant 0 : i32
    %2 = arith.minsi %1, %c0_i32 : i32
    %c0_i32_0 = arith.constant 0 : i32
    %c0_i32_1 = arith.constant 0 : i32
    return %2, %c0_i32_0 : i32, i32
  }
  func.func @transform_1(%arg0: i32, %arg1: i32) -> (i32, i32) {
    %c1_i32 = arith.constant 1 : i32
    %0 = arith.muli %arg0, %c1_i32 : i32
    %1 = arith.addi %0, %arg1 : i32
    %c0_i32 = arith.constant 0 : i32
    %2 = arith.minsi %1, %c0_i32 : i32
    %c0_i32_0 = arith.constant 0 : i32
    %c0_i32_1 = arith.constant 0 : i32
    return %2, %c0_i32_0 : i32, i32
  }
  func.func @transform_2(%arg0: i32, %arg1: i32) -> (i32, i32) {
    %c1_i32 = arith.constant 1 : i32
    %0 = arith.muli %arg0, %c1_i32 : i32
    %1 = arith.addi %0, %arg1 : i32
    %c0_i32 = arith.constant 0 : i32
    %2 = arith.minsi %1, %c0_i32 : i32
    %c0_i32_0 = arith.constant 0 : i32
    %c0_i32_1 = arith.constant 0 : i32
    return %2, %c0_i32_0 : i32, i32
  }
  func.func @transform_3(%arg0: i32, %arg1: i32) -> (i32, i32, i32) {
    %c0_i32 = arith.constant 0 : i32
    %c0_i32_0 = arith.constant 0 : i32
    %c0_i32_1 = arith.constant 0 : i32
    return %arg0, %c0_i32, %c0_i32_0 : i32, i32, i32
  }
}

</mosaic_0001>

<llo_original>
// kernel: tpu_custom_call.1
$region0: #{tpu_custom_call.1}
  #allocation0 [shape = 'u32[]', space=smem, size = 0x4, offset = 0x4, fixed_abs, tag = 'smem constant byte address 0x4 - core index']
  #allocation1 [shape = 'u32[144,128]{1,0:T(1,128)}', space=vmem, size = 0x12000, scoped, tag = 'internal scratch']
  #allocation2 [shape = 'f32[8,128]{1,0:T(8,128)}', space=vmem, size = 0x1000, scoped, tag = 'scratch operand']
  %s0 = inlined_call_operand.hbm [shape: f32[16,128], index: 0, kind: input, shape index: {}]
  %s1 = inlined_call_operand.hbm [shape: f32[16,128], index: 1, kind: input, shape index: {}]
  %s2 = inlined_call_operand.hbm [shape: f32[16,128], index: 2, kind: input, shape index: {}]
  %s3 = inlined_call_operand.hbm [shape: f32[2,8,128], index: 3, kind: output, shape index: {}]
  %s4 = sld [smem:[#allocation0]]
  $region73: #{tpu_custom_call.1} parent=0
    _
  %s6 = ssub.s32 1, %s4
  %s7 = scalar_select 0, %s6, %s4
  $region1: #{tpu_custom_call.1} parent=0
    #allocation3 [shape = 'u8[16384]{0}', space=vmem, size = 0x4000, scoped, tag = 'input window, operand 0']
    #allocation4 [shape = 's32[2]{0}', space=sflag, size = 0x8, scoped, tag = 'scoped memory for tpu_custom_call.1']
    #allocation5 [shape = 's32[2]{0}', space=sflag, size = 0x8, scoped, tag = 'scoped memory for tpu_custom_call.1']
    #allocation6 [shape = 'u8[16384]{0}', space=vmem, size = 0x4000, scoped, tag = 'input window, operand 1']
    #allocation7 [shape = 's32[2]{0}', space=sflag, size = 0x8, scoped, tag = 'scoped memory for tpu_custom_call.1']
    #allocation8 [shape = 'u8[16384]{0}', space=vmem, size = 0x4000, scoped, tag = 'input window, operand 2']
    #allocation9 [shape = 'u8[8192]{0}', space=vmem, size = 0x2000, scoped, tag = 'output window, operand 0']
    %8 = vsyncpa [#allocation4], 0
    %s9 = scalar_lea.sflag [#allocation4], 1
    %10 = vsyncpa %s9, 0
    %11 = vsyncpa [#allocation7], 0
    %s12 = scalar_lea.sflag [#allocation7], 1
    %13 = vsyncpa %s12, 0
    %14 = vsyncpa [#allocation5], 0
    %s15 = scalar_lea.sflag [#allocation5], 1
    %16 = vsyncpa %s15, 0
    loop: start=0, step=1, limit=4
    $region2: #{tpu_custom_call.1} parent=1 // loop_pre_header
      _
    $region3: #{tpu_custom_call.1} parent=1 // loop_header
      %s18 = sphi 0, %s22
      %p19 = scmp.ge.s32.totalorder %s18, 4
      %s25 = sphi 0, %s37
      %s26 = sphi 0, %s33
      %s27 = sphi 0, %s25
      %s28 = sphi 0, %s26
      %s29 = sphi 0, %s27
      %s30 = sphi 0, %s28
      %s46 = sphi 0, %s48
      %s49 = sphi 0, %s46
      %s50 = sphi 0, %s49
      %s66 = sphi 0, %s50
      %s78 = sphi 0, %s80
      %s81 = sphi 0, %s78
      %s82 = sphi 0, %s81
      %s98 = sphi 0, %s82
      %s110 = sphi 0, %s112
      %s113 = sphi 0, %s110
      %s114 = sphi 0, %s113
      %s130 = sphi 0, %s114
      %s136 = sphi 0, %s138
      %s139 = sphi 0, %s136
      %s140 = sphi 0, %s139
      %s156 = sphi 0, %s140
    $region4: #{tpu_custom_call.1} parent=1 // loop_header_branch
      %21 = sbr.rel (%p19) target = $region8
    $region5: #{tpu_custom_call.1} parent=1 // loop_body
      %s23 = ssub.s32 %s18, 1
      %s24 = ssub.s32 %s18, 2
      %s31 = sadd.s32 1, %s26
      %p32 = scmp.ge.s32.totalorder %s31, 1
      %s33 = scalar_select %p32, 0, %s31
      %s34 = sadd.s32 1, %s25
      %s35 = scalar_select %p32, %s34, %s25
      %p36 = scmp.ge.s32.totalorder %s35, 2
      %s37 = scalar_select %p36, 0, %s35
      %s38 = sadd.s32 %s25, %s26
      %p39 = scmp.lt.s32.totalorder %s38, 0
      %s40 = scalar_select %p39, %s38, 0
      %s41 = sadd.s32 %s37, %s33
      %p42 = scmp.lt.s32.totalorder %s41, 0
      %s43 = scalar_select %p42, %s41, 0
      %s44 = ssub.s32 %s40, %s43
      %p45 = scmp.eq.s32.totalorder %s44, 0
      %s47 = sadd.s32 %s46, 1
      %s48 = scalar_select %p45, %s46, %s47
      %p51 = pneg %p45
      %p52 = scmp.eq.s32.totalorder %s18, 1
      %p53 = por %p51, %p52
      %p54 = scmp.ne.s32.totalorder %s46, %s49
      %p55 = scmp.eq.s32.totalorder %s18, 0
      %p56 = por %p54, %p55
      %p57 = scmp.ne.s32.totalorder %s46, %s49
      %p58 = scmp.eq.s32.totalorder %s23, 1
      %p59 = por %p57, %p58
      %p60 = scmp.ne.s32.totalorder %s49, %s50
      %p61 = scmp.eq.s32.totalorder %s23, 0
      %p62 = por %p60, %p61
      %p63 = scmp.ne.s32.totalorder %s49, %s50
      %p64 = scmp.eq.s32.totalorder %s24, 1
      %p65 = por %p63, %p64
      %p67 = scmp.ne.s32.totalorder %s50, %s66
      %p68 = scmp.eq.s32.totalorder %s24, 0
      %p69 = por %p67, %p68
      %s70 = sadd.s32 %s25, %s26
      %p71 = scmp.lt.s32.totalorder %s70, 0
      %s72 = scalar_select %p71, %s70, 0
      %s73 = sadd.s32 %s37, %s33
      %p74 = scmp.lt.s32.totalorder %s73, 0
      %s75 = scalar_select %p74, %s73, 0
      %s76 = ssub.s32 %s72, %s75
      %p77 = scmp.eq.s32.totalorder %s76, 0
      %s79 = sadd.s32 %s78, 1
      %s80 = scalar_select %p77, %s78, %s79
      %p83 = pneg %p77
      %p84 = scmp.eq.s32.totalorder %s18, 1
      %p85 = por %p83, %p84
      %p86 = scmp.ne.s32.totalorder %s78, %s81
      %p87 = scmp.eq.s32.totalorder %s18, 0
      %p88 = por %p86, %p87
      %p89 = scmp.ne.s32.totalorder %s78, %s81
      %p90 = scmp.eq.s32.totalorder %s23, 1
      %p91 = por %p89, %p90
      %p92 = scmp.ne.s32.totalorder %s81, %s82
      %p93 = scmp.eq.s32.totalorder %s23, 0
      %p94 = por %p92, %p93
      %p95 = scmp.ne.s32.totalorder %s81, %s82
      %p96 = scmp.eq.s32.totalorder %s24, 1
      %p97 = por %p95, %p96
      %p99 = scmp.ne.s32.totalorder %s82, %s98
      %p100 = scmp.eq.s32.totalorder %s24, 0
      %p101 = por %p99, %p100
      %s102 = sadd.s32 %s25, %s26
      %p103 = scmp.lt.s32.totalorder %s102, 0
      %s104 = scalar_select %p103, %s102, 0
      %s105 = sadd.s32 %s37, %s33
      %p106 = scmp.lt.s32.totalorder %s105, 0
      %s107 = scalar_select %p106, %s105, 0
      %s108 = ssub.s32 %s104, %s107
      %p109 = scmp.eq.s32.totalorder %s108, 0
      %s111 = sadd.s32 %s110, 1
      %s112 = scalar_select %p109, %s110, %s111
      %p115 = pneg %p109
      %p116 = scmp.eq.s32.totalorder %s18, 1
      %p117 = por %p115, %p116
      %p118 = scmp.ne.s32.totalorder %s110, %s113
      %p119 = scmp.eq.s32.totalorder %s18, 0
      %p120 = por %p118, %p119
      %p121 = scmp.ne.s32.totalorder %s110, %s113
      %p122 = scmp.eq.s32.totalorder %s23, 1
      %p123 = por %p121, %p122
      %p124 = scmp.ne.s32.totalorder %s113, %s114
      %p125 = scmp.eq.s32.totalorder %s23, 0
      %p126 = por %p124, %p125
      %p127 = scmp.ne.s32.totalorder %s113, %s114
      %p128 = scmp.eq.s32.totalorder %s24, 1
      %p129 = por %p127, %p128
      %p131 = scmp.ne.s32.totalorder %s114, %s130
      %p132 = scmp.eq.s32.totalorder %s24, 0
      %p133 = por %p131, %p132
      %s134 = ssub.s32 %s25, %s37
      %p135 = scmp.eq.s32.totalorder %s134, 0
      %s137 = sadd.s32 %s136, 1
      %s138 = scalar_select %p135, %s136, %s137
      %p141 = pneg %p135
      %p142 = scmp.eq.s32.totalorder %s18, 1
      %p143 = por %p141, %p142
      %p144 = scmp.ne.s32.totalorder %s136, %s139
      %p145 = scmp.eq.s32.totalorder %s18, 0
      %p146 = por %p144, %p145
      %p147 = scmp.ne.s32.totalorder %s136, %s139
      %p148 = scmp.eq.s32.totalorder %s23, 1
      %p149 = por %p147, %p148
      %p150 = scmp.ne.s32.totalorder %s139, %s140
      %p151 = scmp.eq.s32.totalorder %s23, 0
      %p152 = por %p150, %p151
      %p153 = scmp.ne.s32.totalorder %s139, %s140
      %p154 = scmp.eq.s32.totalorder %s24, 1
      %p155 = por %p153, %p154
      %p157 = scmp.ne.s32.totalorder %s140, %s156
      %p158 = scmp.eq.s32.totalorder %s24, 0
      %p159 = por %p157, %p158
      %p160 = scmp.le.s32.totalorder 1, %s18
      %p161 = scmp.lt.s32.totalorder %s18, 3
      %p162 = pnand %p160, %p161
      %p163 = pneg %p162
      // Predicated region
      $region9: #{tpu_custom_call.1} parent=5 // pred_check
        _
      $region10: #{tpu_custom_call.1} parent=5 // pred_check_branch
        %165 = sbr.rel (%p162) target = $region12
      $region11: #{tpu_custom_call.1} parent=5 // pred_region
        %s166 = ssub.s32 %s18, 1
      $region12: #{tpu_custom_call.1} parent=5 // pred_fallthru
        _
      %p167 = scmp.lt.s32.totalorder %s18, 2
      // Predicated region
      $region13: #{tpu_custom_call.1} parent=5 // pred_check
        %p168 = pneg %p167
      $region14: #{tpu_custom_call.1} parent=5 // pred_check_branch
        %170 = sbr.rel (%p168) target = $region16
      $region15: #{tpu_custom_call.1} parent=5 // pred_region
        // Predicated region
        $region17: #{tpu_custom_call.1} parent=15 // pred_check
          %p171 = pneg %p56
        $region18: #{tpu_custom_call.1} parent=15 // pred_check_branch
          %173 = sbr.rel (%p171) target = $region20
        $region19: #{tpu_custom_call.1} parent=15 // pred_region
          %s174 = sand.u32 %s46, 1
          %s175 = scalar_lea.sflag [#allocation4], %s174
          %s176 = sand.u32 %s46, 1
          %s177 = smul.addr %s176, 16
          %s178 = scalar_lea.vmem [#allocation3], %s177
          %s179 = sadd.s32 %s25, %s26
          %p180 = scmp.lt.s32.totalorder %s179, 0
          %s181 = scalar_select %p180, %s179, 0
          %s182 = smul.u32 2, %s181
          %s184 = ssub.s32 256, 256
          %185 = vsyncadd %s175, %s184
          %s186 = smul.addr %s182, 128
          %s187 = scalar_lea.hbm %s0, %s186
          %s188 = sshll.u32 %s178, 4
          %s189 = int_to_ptr.vmem [resolvable:$true] %s188
          %194 = dma.hbm_to_vmem [thread:$0]  %s187, 256, %s189, %s175, 128, 128, 8
        $region20: #{tpu_custom_call.1} parent=15 // pred_fallthru
          _
        // Predicated region
        $region21: #{tpu_custom_call.1} parent=15 // pred_check
          %p195 = pneg %p88
        $region22: #{tpu_custom_call.1} parent=15 // pred_check_branch
          %197 = sbr.rel (%p195) target = $region24
        $region23: #{tpu_custom_call.1} parent=15 // pred_region
          %s198 = sand.u32 %s18, 1
          %s199 = scalar_lea.sflag [#allocation7], %s198
          %s200 = sand.u32 %s78, 1
          %s201 = smul.addr %s200, 16
          %s202 = scalar_lea.vmem [#allocation6], %s201
          %s203 = sadd.s32 %s25, %s26
          %p204 = scmp.lt.s32.totalorder %s203, 0
          %s205 = scalar_select %p204, %s203, 0
          %s206 = smul.u32 2, %s205
          %s208 = ssub.s32 256, 256
          %209 = vsyncadd %s199, %s208
          %s210 = smul.addr %s206, 128
          %s211 = scalar_lea.hbm %s1, %s210
          %s212 = sshll.u32 %s202, 4
          %s213 = int_to_ptr.vmem [resolvable:$true] %s212
          %218 = dma.hbm_to_vmem [thread:$0]  %s211, 256, %s213, %s199, 128, 128, 8
        $region24: #{tpu_custom_call.1} parent=15 // pred_fallthru
          _
        // Predicated region
        $region25: #{tpu_custom_call.1} parent=15 // pred_check
          %p219 = pneg %p120
        $region26: #{tpu_custom_call.1} parent=15 // pred_check_branch
          %221 = sbr.rel (%p219) target = $region28
        $region27: #{tpu_custom_call.1} parent=15 // pred_region
          %s222 = sand.u32 %s18, 1
          %s223 = scalar_lea.sflag [#allocation7], %s222
          %s224 = sand.u32 %s110, 1
          %s225 = smul.addr %s224, 16
          %s226 = scalar_lea.vmem [#allocation8], %s225
          %s227 = sadd.s32 %s25, %s26
          %p228 = scmp.lt.s32.totalorder %s227, 0
          %s229 = scalar_select %p228, %s227, 0
          %s230 = smul.u32 2, %s229
          %s232 = ssub.s32 256, 256
          %233 = vsyncadd %s223, %s232
          %s234 = smul.addr %s230, 128
          %s235 = scalar_lea.hbm %s2, %s234
          %s236 = sshll.u32 %s226, 4
          %s237 = int_to_ptr.vmem [resolvable:$true] %s236
          %242 = dma.hbm_to_vmem [thread:$0]  %s235, 256, %s237, %s223, 128, 128, 8
        $region28: #{tpu_custom_call.1} parent=15 // pred_fallthru
          _
      $region16: #{tpu_custom_call.1} parent=5 // pred_fallthru
        _
      %p243 = scmp.le.s32.totalorder 1, %s18
      %p244 = scmp.lt.s32.totalorder %s18, 3
      %p245 = pnand %p243, %p244
      %p246 = pneg %p245
      // Predicated region
      $region29: #{tpu_custom_call.1} parent=5 // pred_check
        _
      $region30: #{tpu_custom_call.1} parent=5 // pred_check_branch
        %248 = sbr.rel (%p245) target = $region32
      $region31: #{tpu_custom_call.1} parent=5 // pred_region
        %s249 = ssub.s32 %s18, 1
        %s250 = sand.u32 %s49, 1
        %s251 = scalar_lea.sflag [#allocation4], %s250
        %s252 = sand.u32 %s49, 1
        %s253 = smul.addr %s252, 16
        %s254 = scalar_lea.vmem [#allocation3], %s253
        // Predicated region
        $region33: #{tpu_custom_call.1} parent=31 // pred_check
          %p255 = pneg %p62
        $region34: #{tpu_custom_call.1} parent=31 // pred_check_branch
          %257 = sbr.rel (%p255) target = $region36
        $region35: #{tpu_custom_call.1} parent=31 // pred_region
          %258 = dma.done %s251, 256
        $region36: #{tpu_custom_call.1} parent=31 // pred_fallthru
          _
        %s259 = sand.u32 %s23, 1
        %s260 = scalar_lea.sflag [#allocation7], %s259
        %s261 = sand.u32 %s81, 1
        %s262 = smul.addr %s261, 16
        %s263 = scalar_lea.vmem [#allocation6], %s262
        // Predicated region
        $region37: #{tpu_custom_call.1} parent=31 // pred_check
          %p264 = pneg %p94
        $region38: #{tpu_custom_call.1} parent=31 // pred_check_branch
          %266 = sbr.rel (%p264) target = $region40
        $region39: #{tpu_custom_call.1} parent=31 // pred_region
          %267 = dma.done %s260, 256
        $region40: #{tpu_custom_call.1} parent=31 // pred_fallthru
          _
        %s268 = sand.u32 %s23, 1
        %s269 = scalar_lea.sflag [#allocation7], %s268
        %s270 = sand.u32 %s113, 1
        %s271 = smul.addr %s270, 16
        %s272 = scalar_lea.vmem [#allocation8], %s271
        // Predicated region
        $region41: #{tpu_custom_call.1} parent=31 // pred_check
          %p273 = pneg %p126
        $region42: #{tpu_custom_call.1} parent=31 // pred_check_branch
          %275 = sbr.rel (%p273) target = $region44
        $region43: #{tpu_custom_call.1} parent=31 // pred_region
          %276 = dma.done %s269, 256
        $region44: #{tpu_custom_call.1} parent=31 // pred_fallthru
          _
        %s277 = sand.u32 %s49, 1
        %s278 = scalar_lea.sflag [#allocation4], %s277
        %s279 = sand.u32 %s49, 1
        %s280 = smul.addr %s279, 16
        %s281 = scalar_lea.vmem [#allocation3], %s280
        %p282 = pneg %p62
        %p283 = pneg %p59
        %s284 = sand.u32 %s23, 1
        %s285 = scalar_lea.sflag [#allocation7], %s284
        %s286 = sand.u32 %s81, 1
        %s287 = smul.addr %s286, 16
        %s288 = scalar_lea.vmem [#allocation6], %s287
        %p289 = pneg %p94
        %p290 = pneg %p91
        %s291 = sand.u32 %s23, 1
        %s292 = scalar_lea.sflag [#allocation7], %s291
        %s293 = sand.u32 %s113, 1
        %s294 = smul.addr %s293, 16
        %s295 = scalar_lea.vmem [#allocation8], %s294
        %p296 = pneg %p126
        %p297 = pneg %p123
        %p298 = pneg %p152
        %p299 = pneg %p149
        %s300 = sand.u32 %s139, 1
        %s301 = scalar_lea.sflag [#allocation5], %s300
        %s302 = sand.u32 %s139, 1
        %s303 = smul.addr %s302, 8
        %s304 = scalar_lea.vmem [#allocation9], %s303
        %s305 = sadd.s32 %s27, %s28
        %p306 = scmp.lt.s32.totalorder %s305, 0
        %s307 = scalar_select %p306, %s305, 0
        %s308 = smul.u32 2, %s307
        %s309 = sadd.s32 %s27, %s28
        %p310 = scmp.lt.s32.totalorder %s309, 0
        %s311 = scalar_select %p310, %s309, 0
        %s312 = smul.u32 2, %s311
        %s313 = sadd.s32 %s27, %s28
        %p314 = scmp.lt.s32.totalorder %s313, 0
        %s315 = scalar_select %p314, %s313, 0
        %s316 = smul.u32 2, %s315
        %p317 = scmp.eq.s32.totalorder %s28, 0
        // Predicated region
        $region45: #{tpu_custom_call.1} parent=31 // pred_check
          %p318 = pneg %p317
        $region46: #{tpu_custom_call.1} parent=31 // pred_check_branch
          %320 = sbr.rel (%p318) target = $region48
        $region47: #{tpu_custom_call.1} parent=31 // pred_region
          %321 = vst [vmem:[#allocation2] sm:$0xff] 0.0
        $region48: #{tpu_custom_call.1} parent=31 // pred_fallthru
          _
        %v322 = vld [vmem:[%s254] sm:$0xff]
        %v323 = vld [vmem:[%s254 + $0x8] sm:$0xff]
        %v324 = vld [vmem:[%s263] sm:$0xff]
        %v325 = vld [vmem:[%s263 + $0x8] sm:$0xff]
        %v326 = vsub.f32 %v322, %v324
        %v327 = vsub.f32 %v323, %v325
        %v328 = vmul.f32 %v326, %v326
        %v329 = vmul.f32 %v327, %v327
        %v330 = vld [vmem:[%s272] sm:$0xff]
        %v331 = vld [vmem:[%s272 + $0x8] sm:$0xff]
        %v332 = vmul.f32 %v328, %v330
        %v333 = vmul.f32 %v329, %v331
        %s334 = sadd.s32 %s27, %s28
        %p335 = scmp.lt.s32.totalorder %s334, 1
        // Predicated region
        $region49: #{tpu_custom_call.1} parent=31 // pred_check
          %p336 = pneg %p335
        $region50: #{tpu_custom_call.1} parent=31 // pred_check_branch
          %338 = sbr.rel (%p336) target = $region52
        $region51: #{tpu_custom_call.1} parent=31 // pred_region
          %v339 = vld [vmem:[#allocation2] sm:$0xff]
          %v340 = vadd.f32 %v332, %v333
          %v341 = vadd.f32 %v339, %v340
          %342 = vst [vmem:[#allocation2] sm:$0xff] %v341
        $region52: #{tpu_custom_call.1} parent=31 // pred_fallthru
          _
        %p343 = scmp.ge.s32.totalorder %s334, 1
        // Predicated region
        $region53: #{tpu_custom_call.1} parent=31 // pred_check
          %p344 = pneg %p343
        $region54: #{tpu_custom_call.1} parent=31 // pred_check_branch
          %346 = sbr.rel (%p344) target = $region56
        $region55: #{tpu_custom_call.1} parent=31 // pred_region
          %s347 = smul.u32 %s334, 16
          %v348 = vlaneseq
          %v349 = vshrl.u32 %v348, 7
          %v350 = vadd.s32 %v349, 8
          %v351 = vstv %s347
          %v352 = vadd.s32 %v351, %v349
          %v353 = vadd.s32 %v351, %v350
          %vm354 = vcmp.lt.s32.totalorder %v352, 16
          %vm355 = vcmp.lt.s32.totalorder %v353, 16
          %v356 = vsel %vm354, %v332, 0.0
          %v357 = vsel %vm355, %v333, 0.0
          %v358 = vld [vmem:[#allocation2] sm:$0xff]
          %v359 = vadd.f32 %v356, %v357
          %v360 = vadd.f32 %v358, %v359
          %361 = vst [vmem:[#allocation2] sm:$0xff] %v360
        $region56: #{tpu_custom_call.1} parent=31 // pred_fallthru
          _
        // Predicated region
        $region57: #{tpu_custom_call.1} parent=31 // pred_check
          %p362 = pneg %p317
        $region58: #{tpu_custom_call.1} parent=31 // pred_check_branch
          %364 = sbr.rel (%p362) target = $region60
        $region59: #{tpu_custom_call.1} parent=31 // pred_region
          %v365 = vld [vmem:[#allocation2] sm:$0xff]
          %366 = vst [vmem:[%s304] sm:$0xff] %v365
        $region60: #{tpu_custom_call.1} parent=31 // pred_fallthru
          _
        %s367 = sand.u32 %s139, 1
        %s368 = scalar_lea.sflag [#allocation5], %s367
        %s369 = sand.u32 %s139, 1
        %s370 = smul.addr %s369, 8
        %s371 = scalar_lea.vmem [#allocation9], %s370
        // Predicated region
        $region61: #{tpu_custom_call.1} parent=31 // pred_check
          %p372 = pneg %p149
        $region62: #{tpu_custom_call.1} parent=31 // pred_check_branch
          %374 = sbr.rel (%p372) target = $region64
        $region63: #{tpu_custom_call.1} parent=31 // pred_region
          %s376 = ssub.s32 128, 128
          %377 = vsyncadd %s368, %s376
          %s378 = smul.addr %s27, 128
          %s379 = scalar_lea.hbm %s3, %s378
          %s381 = sshll.u32 %s371, 4
          %s382 = int_to_ptr.vmem [resolvable:$true] %s381
          %384 = dma.vmem_to_hbm [thread:$0]  %s382, 128, %s379, %s368
        $region64: #{tpu_custom_call.1} parent=31 // pred_fallthru
          _
      $region32: #{tpu_custom_call.1} parent=5 // pred_fallthru
        _
      %p385 = scmp.le.s32.totalorder 2, %s18
      // Predicated region
      $region65: #{tpu_custom_call.1} parent=5 // pred_check
        %p386 = pneg %p385
      $region66: #{tpu_custom_call.1} parent=5 // pred_check_branch
        %388 = sbr.rel (%p386) target = $region68
      $region67: #{tpu_custom_call.1} parent=5 // pred_region
        %s389 = ssub.s32 %s18, 2
        // Predicated region
        $region69: #{tpu_custom_call.1} parent=67 // pred_check
          %p390 = pneg %p155
        $region70: #{tpu_custom_call.1} parent=67 // pred_check_branch
          %392 = sbr.rel (%p390) target = $region72
        $region71: #{tpu_custom_call.1} parent=67 // pred_region
          %s393 = sand.u32 %s140, 1
          %s394 = scalar_lea.sflag [#allocation5], %s393
          %s395 = sand.u32 %s140, 1
          %s396 = smul.addr %s395, 8
          %s397 = scalar_lea.vmem [#allocation9], %s396
          %398 = dma.done %s394, 128
        $region72: #{tpu_custom_call.1} parent=67 // pred_fallthru
          _
      $region68: #{tpu_custom_call.1} parent=5 // pred_fallthru
        _
    $region6: #{tpu_custom_call.1} parent=1 // loop_footer
      %s22 = sadd.s32 1, %s18
    $region7: #{tpu_custom_call.1} parent=1 // loop_footer_branch
      %17 = sbr.rel target = $region3
    $region8: #{tpu_custom_call.1} parent=1 // loop_exit
      _
    %399 = vsyncpa [#allocation4], 1
    %s400 = scalar_lea.sflag [#allocation4], 1
    %401 = vsyncpa %s400, 1
    %402 = vsyncpa [#allocation7], 1
    %s403 = scalar_lea.sflag [#allocation7], 1
    %404 = vsyncpa %s403, 1
    %405 = vsyncpa [#allocation5], 1
    %s406 = scalar_lea.sflag [#allocation5], 1
    %407 = vsyncpa %s406, 1

</llo_original>
